<compile_context>
chip_gen: v5e
topology: v5e:2x2
jax: 0.10.0
libtpu: 0.0.40
codegen_flags: <defaults>
</compile_context>

<pallas_src>
import jax
import jax.numpy as jnp
from jax.experimental import pallas as pl
from jax.experimental.pallas import tpu as pltpu

IN_DIM = 226
IN_DIM_PAD = 256
HIDDEN = 32
N_NODES = 8
N_EDGES = 16
N_EDGES_SL = N_EDGES + N_NODES          # self-loops appended -> E' = 24

# Packed parameter slab layout (PARAM_ROWS x HIDDEN, f32):
#   rows [0, 256)      : conv1 weight, zero-padded 226 -> 256 on the input dim
#   rows [256, 288)    : conv2 weight
#   rows [288, 320)    : conv3 weight
#   row  320 / 321 / 322 : b1 / b2 / b3
#   row  323           : lin.weight (pre-transposed to a length-H row)
#   row  324, col 0    : lin.bias
_ROW_W2 = IN_DIM_PAD
_ROW_W3 = IN_DIM_PAD + HIDDEN
_ROW_B1 = IN_DIM_PAD + 2 * HIDDEN
_ROW_B2 = _ROW_B1 + 1
_ROW_B3 = _ROW_B1 + 2
_ROW_LW = _ROW_B1 + 3
_ROW_LB = _ROW_B1 + 4
PARAM_ROWS = IN_DIM_PAD + 2 * HIDDEN + 8     # 328 (padded to a multiple of 8)


def _gcn_kernel(params_ref, x_ref, edges_ref, out_ref):
    """Whole GCN forward for one graph; all operands VMEM-resident."""
    n = x_ref.shape[0]

    # ---- normalized adjacency, built once per graph ------------------------
    ids = jax.lax.broadcasted_iota(jnp.int32, (1, n), 1)              # (1, N)
    src = edges_ref[:, 0:1]                                           # (E', 1)
    tgt = edges_ref[:, 1:2]                                           # (E', 1)
    oh_src = (src == ids).astype(jnp.float32)                         # (E', N)
    oh_tgt = (tgt == ids).astype(jnp.float32)                         # (E', N)
    # a_hat[i, j] = #edges j -> i (diagonal = self loops); contract the E' axis.
    a_hat = jax.lax.dot_general(
        oh_tgt, oh_src, (((0,), (0,)), ((), ())),
        preferred_element_type=jnp.float32)                           # (N, N)
    # deg[i] = in-degree(i) + 1.  Row orientation comes straight from the
    # (E', N) target one-hot, column orientation from a_hat row sums -> no
    # transpose anywhere, and the symmetric normalization is folded in ONCE.
    d_row = jax.lax.rsqrt(jnp.sum(oh_tgt, axis=0, keepdims=True))     # (1, N)
    d_col = jax.lax.rsqrt(jnp.sum(a_hat, axis=1, keepdims=True))      # (N, 1)
    a_norm = d_col * a_hat * d_row                                    # (N, N)

    def conv(h, w, b):
        p = jnp.dot(h, w, preferred_element_type=jnp.float32)         # (N, H)
        agg = jnp.dot(a_norm, p, preferred_element_type=jnp.float32)  # (N, H)
        return jnp.maximum(agg + b, 0.0)

    h = conv(x_ref[...], params_ref[0:_ROW_W2, :],
             params_ref[_ROW_B1:_ROW_B1 + 1, :])                      # conv1+relu
    h = conv(h, params_ref[_ROW_W2:_ROW_W3, :],
             params_ref[_ROW_B2:_ROW_B2 + 1, :])                      # conv2+relu
    h = conv(h, params_ref[_ROW_W3:_ROW_B1, :],
             params_ref[_ROW_B3:_ROW_B3 + 1, :])                      # conv3+relu

    # global_mean_pool(batch=None) -> (1, H), then Linear(H, 1).
    pooled = jnp.mean(h, axis=0, keepdims=True)                        # (1, H)
    score = jnp.sum(pooled * params_ref[_ROW_LW:_ROW_LW + 1, :],
                    axis=1, keepdims=True)                             # (1, 1)
    score = score + params_ref[_ROW_LB:_ROW_LB + 1, 0:1]
    # Lane-dense, unmasked store; wrapper reads element [0, 0].
    out_ref[...] = jnp.broadcast_to(score, out_ref.shape)


def pack_params(w1, b1, w2, b2, w3, b3, lin_w, lin_b):
    """Pack all 8 GCN parameter tensors into ONE (PARAM_ROWS, HIDDEN) slab."""
    hidden = w2.shape[0]
    slab = jnp.zeros((PARAM_ROWS, hidden), jnp.float32)
    slab = slab.at[:w1.shape[0], :].set(w1.astype(jnp.float32))
    slab = slab.at[_ROW_W2:_ROW_W2 + hidden, :].set(w2.astype(jnp.float32))
    slab = slab.at[_ROW_W3:_ROW_W3 + hidden, :].set(w3.astype(jnp.float32))
    slab = slab.at[_ROW_B1, :].set(b1.astype(jnp.float32))
    slab = slab.at[_ROW_B2, :].set(b2.astype(jnp.float32))
    slab = slab.at[_ROW_B3, :].set(b3.astype(jnp.float32))
    slab = slab.at[_ROW_LW, :].set(lin_w.reshape(hidden).astype(jnp.float32))
    slab = slab.at[_ROW_LB, 0].set(lin_b.reshape(()).astype(jnp.float32))
    return slab


def pack_graphs(xs, edge_indices):
    """One-time host-side packing of a batch of graphs.

    xs:           (B, N, 226) f32 node features
    edge_indices: (B, 2, E) int edge lists WITHOUT pre-existing self-loops
                  (self-loops are appended here, matching add_remaining_self_loops
                  on loop-free input).
    Returns (x_pad (B,N,256) f32, edges (B, E+N, 2) int32 [lane0=src, lane1=tgt]).
    """
    b, n, f = xs.shape
    x_pad = jnp.pad(xs.astype(jnp.float32), ((0, 0), (0, 0), (0, IN_DIM_PAD - f)))
    loops = jnp.broadcast_to(jnp.arange(n, dtype=jnp.int32)[None, :], (b, n))
    src = jnp.concatenate([edge_indices[:, 0, :].astype(jnp.int32), loops], axis=1)
    tgt = jnp.concatenate([edge_indices[:, 1, :].astype(jnp.int32), loops], axis=1)
    edges = jnp.stack([src, tgt], axis=-1)                     # (B, E', 2)
    return x_pad, edges


@jax.jit
def gcn_forward(params, x_pad, edges):
    """params: (328,32) slab; x_pad: (B,N,256); edges: (B,E',2). Returns (B,1)."""
    b, n, _ = x_pad.shape
    e2 = edges.shape[1]
    out = pl.pallas_call(
        _gcn_kernel,
        out_shape=jax.ShapeDtypeStruct((b, 8, 128), jnp.float32),
        grid=(b,),
        in_specs=[
            pl.BlockSpec((PARAM_ROWS, HIDDEN), lambda i: (0, 0)),   # fetched once
            pl.BlockSpec((None, n, IN_DIM_PAD), lambda i: (i, 0, 0)),
            pl.BlockSpec((None, e2, 2), lambda i: (i, 0, 0)),
        ],
        out_specs=pl.BlockSpec((None, 8, 128), lambda i: (i, 0, 0)),
        compiler_params=pltpu.CompilerParams(
            dimension_semantics=("parallel",)),
    )(params, x_pad, edges)
    return out[:, 0, 0:1]                                       # (B, 1)


def gcn_reference(x, edge_index, w1, b1, w2, b2, w3, b3, lin_w, lin_b):
    """Independent dense-JAX reference of the same GCN forward (single graph)."""
    n = x.shape[0]
    a = jnp.zeros((n, n), jnp.float32).at[edge_index[1], edge_index[0]].add(1.0)
    a = a + jnp.eye(n, dtype=jnp.float32)
    d = jax.lax.rsqrt(jnp.sum(a, axis=1))
    a_norm = d[:, None] * a * d[None, :]
    h = jax.nn.relu(a_norm @ (x @ w1) + b1)
    h = jax.nn.relu(a_norm @ (h @ w2) + b2)
    h = jax.nn.relu(a_norm @ (h @ w3) + b3)
    return jnp.mean(h, axis=0, keepdims=True) @ lin_w + lin_b


if __name__ == "__main__":
    key = jax.random.PRNGKey(0)
    kx, ks, ko, k1, k2, k3, kb, kl = jax.random.split(key, 8)

    # Small synthetic batch: 4 graphs x (8 nodes, 16 directed edges, 226-d feats).
    B = 4
    xs = jax.random.normal(kx, (B, N_NODES, IN_DIM), jnp.float32)
    src = jax.random.randint(ks, (B, N_EDGES), 0, N_NODES, jnp.int32)
    off = jax.random.randint(ko, (B, N_EDGES), 1, N_NODES, jnp.int32)
    tgt = (src + off) % N_NODES                    # guarantees no self-loops
    edge_indices = jnp.stack([src, tgt], axis=1)   # (B, 2, E)

    # Parameters (conv weights stored transposed as (in, out) so kernels do h @ W).
    w1 = jax.random.normal(k1, (IN_DIM, HIDDEN), jnp.float32) / jnp.sqrt(IN_DIM)
    w2 = jax.random.normal(k2, (HIDDEN, HIDDEN), jnp.float32) / jnp.sqrt(HIDDEN)
    w3 = jax.random.normal(k3, (HIDDEN, HIDDEN), jnp.float32) / jnp.sqrt(HIDDEN)
    b1, b2, b3 = 0.1 * jax.random.normal(kb, (3, HIDDEN), jnp.float32)
    lin_w = jax.random.normal(kl, (HIDDEN, 1), jnp.float32) / jnp.sqrt(HIDDEN)
    lin_b = jnp.full((1,), 0.05, jnp.float32)

    params = pack_params(w1, b1, w2, b2, w3, b3, lin_w, lin_b)
    x_pad, edges = pack_graphs(xs, edge_indices)

    out = gcn_forward(params, x_pad, edges)
    out = jax.block_until_ready(out)
    assert out.shape == (B, 1) and out.dtype == jnp.float32

    for g in range(B):
        ref = gcn_reference(xs[g], edge_indices[g],
                            w1, b1, w2, b2, w3, b3, lin_w, lin_b)
        assert jnp.allclose(out[g:g + 1], ref, atol=1e-4, rtol=1e-4), (g, out[g], ref)
    print("KERNEL_OK")
</pallas_src>

<mosaic_0001>
module attributes {stable_mosaic.version = 11 : i64} {
  func.func @_gcn_kernel(%arg0: i32, %arg1: memref<328x32xf32, #tpu.memory_space<vmem>>, %arg2: memref<1x8x256xf32, #tpu.memory_space<vmem>>, %arg3: memref<1x24x2xi32, #tpu.memory_space<vmem>>, %arg4: memref<1x8x128xf32, #tpu.memory_space<vmem>>) attributes {dimension_semantics = [#tpu.dimension_semantics<parallel>], iteration_bounds = array<i64: 4>, scalar_prefetch = 0 : i64, scratch_operands = 0 : i64, tpu.core_type = #tpu.core_type<tc>, window_params = [{pipeline_mode = #tpu.pipeline_mode<synchronous>, transform_indices = @transform_0, window_bounds = array<i64: 328, 32>}, {transform_indices = @transform_1, window_bounds = array<i64: 1, 8, 256>}, {transform_indices = @transform_2, window_bounds = array<i64: 1, 24, 2>}, {transform_indices = @transform_3, window_bounds = array<i64: 1, 8, 128>}]} {
    %0 = tpu.iota {dimensions = array<i32: 1>} : vector<1x8xi32>
    %c0 = arith.constant 0 : index
    %c0_0 = arith.constant 0 : index
    %c0_1 = arith.constant 0 : index
    %1 = vector.load %arg3[%c0, %c0_0, %c0_1] : memref<1x24x2xi32, #tpu.memory_space<vmem>>, vector<1x24x1xi32>
    %2 = vector.shape_cast %1 : vector<1x24x1xi32> to vector<24x1xi32>
    %c0_2 = arith.constant 0 : index
    %c0_3 = arith.constant 0 : index
    %c1 = arith.constant 1 : index
    %3 = vector.load %arg3[%c0_2, %c0_3, %c1] : memref<1x24x2xi32, #tpu.memory_space<vmem>>, vector<1x24x1xi32>
    %4 = vector.shape_cast %3 : vector<1x24x1xi32> to vector<24x1xi32>
    %5 = vector.broadcast %2 : vector<24x1xi32> to vector<24x8xi32>
    %6 = vector.broadcast %0 : vector<1x8xi32> to vector<24x8xi32>
    %7 = arith.cmpi eq, %5, %6 : vector<24x8xi32>
    %8 = arith.extui %7 : vector<24x8xi1> to vector<24x8xi32>
    %9 = arith.sitofp %8 : vector<24x8xi32> to vector<24x8xf32>
    %10 = vector.broadcast %4 : vector<24x1xi32> to vector<24x8xi32>
    %11 = vector.broadcast %0 : vector<1x8xi32> to vector<24x8xi32>
    %12 = arith.cmpi eq, %10, %11 : vector<24x8xi32>
    %13 = arith.extui %12 : vector<24x8xi1> to vector<24x8xi32>
    %14 = arith.sitofp %13 : vector<24x8xi32> to vector<24x8xf32>
    %cst = arith.constant dense<0.000000e+00> : vector<8x8xf32>
    %15 = tpu.matmul %14, %9, %cst {dimension_numbers = #tpu.dot_dimension_numbers<[0], [0], [1], [1], [0, 1, 1, 1], [], []>} : vector<24x8xf32>, vector<24x8xf32>, vector<8x8xf32> -> vector<8x8xf32>
    %cst_4 = arith.constant dense<0.000000e+00> : vector<8xf32>
    %16 = vector.multi_reduction <add>, %14, %cst_4 [0] : vector<24x8xf32> to vector<8xf32>
    %17 = vector.shape_cast %16 : vector<8xf32> to vector<1x8xf32>
    %18 = math.rsqrt %17 : vector<1x8xf32>
    %cst_5 = arith.constant dense<0.000000e+00> : vector<8xf32>
    %19 = vector.multi_reduction <add>, %15, %cst_5 [1] : vector<8x8xf32> to vector<8xf32>
    %20 = vector.shape_cast %19 : vector<8xf32> to vector<8x1xf32>
    %21 = math.rsqrt %20 : vector<8x1xf32>
    %22 = vector.broadcast %21 : vector<8x1xf32> to vector<8x8xf32>
    %23 = arith.mulf %22, %15 : vector<8x8xf32>
    %24 = vector.broadcast %18 : vector<1x8xf32> to vector<8x8xf32>
    %25 = arith.mulf %23, %24 : vector<8x8xf32>
    %c0_6 = arith.constant 0 : index
    %c0_7 = arith.constant 0 : index
    %c0_8 = arith.constant 0 : index
    %26 = vector.load %arg2[%c0_6, %c0_7, %c0_8] : memref<1x8x256xf32, #tpu.memory_space<vmem>>, vector<1x8x256xf32>
    %27 = vector.shape_cast %26 : vector<1x8x256xf32> to vector<8x256xf32>
    %c0_9 = arith.constant 0 : index
    %c0_10 = arith.constant 0 : index
    %28 = vector.load %arg1[%c0_9, %c0_10] : memref<328x32xf32, #tpu.memory_space<vmem>>, vector<256x32xf32>
    %c320 = arith.constant 320 : index
    %c0_11 = arith.constant 0 : index
    %29 = vector.load %arg1[%c320, %c0_11] : memref<328x32xf32, #tpu.memory_space<vmem>>, vector<1x32xf32>
    %cst_12 = arith.constant dense<0.000000e+00> : vector<8x32xf32>
    %30 = tpu.matmul %27, %28, %cst_12 {dimension_numbers = #tpu.dot_dimension_numbers<[1], [0], [0], [1], [0, 0, 1, 1], [], []>} : vector<8x256xf32>, vector<256x32xf32>, vector<8x32xf32> -> vector<8x32xf32>
    %cst_13 = arith.constant dense<0.000000e+00> : vector<8x32xf32>
    %31 = tpu.matmul %25, %30, %cst_13 {dimension_numbers = #tpu.dot_dimension_numbers<[1], [0], [0], [1], [0, 0, 1, 1], [], []>} : vector<8x8xf32>, vector<8x32xf32>, vector<8x32xf32> -> vector<8x32xf32>
    %32 = vector.broadcast %29 : vector<1x32xf32> to vector<8x32xf32>
    %33 = arith.addf %31, %32 : vector<8x32xf32>
    %cst_14 = arith.constant 0.000000e+00 : f32
    %34 = vector.broadcast %cst_14 : f32 to vector<8x32xf32>
    %35 = arith.maximumf %33, %34 : vector<8x32xf32>
    %c256 = arith.constant 256 : index
    %c0_15 = arith.constant 0 : index
    %36 = vector.load %arg1[%c256, %c0_15] : memref<328x32xf32, #tpu.memory_space<vmem>>, vector<32x32xf32>
    %c321 = arith.constant 321 : index
    %c0_16 = arith.constant 0 : index
    %37 = vector.load %arg1[%c321, %c0_16] : memref<328x32xf32, #tpu.memory_space<vmem>>, vector<1x32xf32>
    %cst_17 = arith.constant dense<0.000000e+00> : vector<8x32xf32>
    %38 = tpu.matmul %35, %36, %cst_17 {dimension_numbers = #tpu.dot_dimension_numbers<[1], [0], [0], [1], [0, 0, 1, 1], [], []>} : vector<8x32xf32>, vector<32x32xf32>, vector<8x32xf32> -> vector<8x32xf32>
    %cst_18 = arith.constant dense<0.000000e+00> : vector<8x32xf32>
    %39 = tpu.matmul %25, %38, %cst_18 {dimension_numbers = #tpu.dot_dimension_numbers<[1], [0], [0], [1], [0, 0, 1, 1], [], []>} : vector<8x8xf32>, vector<8x32xf32>, vector<8x32xf32> -> vector<8x32xf32>
    %40 = vector.broadcast %37 : vector<1x32xf32> to vector<8x32xf32>
    %41 = arith.addf %39, %40 : vector<8x32xf32>
    %cst_19 = arith.constant 0.000000e+00 : f32
    %42 = vector.broadcast %cst_19 : f32 to vector<8x32xf32>
    %43 = arith.maximumf %41, %42 : vector<8x32xf32>
    %c288 = arith.constant 288 : index
    %c0_20 = arith.constant 0 : index
    %44 = vector.load %arg1[%c288, %c0_20] : memref<328x32xf32, #tpu.memory_space<vmem>>, vector<32x32xf32>
    %c322 = arith.constant 322 : index
    %c0_21 = arith.constant 0 : index
    %45 = vector.load %arg1[%c322, %c0_21] : memref<328x32xf32, #tpu.memory_space<vmem>>, vector<1x32xf32>
    %cst_22 = arith.constant dense<0.000000e+00> : vector<8x32xf32>
    %46 = tpu.matmul %43, %44, %cst_22 {dimension_numbers = #tpu.dot_dimension_numbers<[1], [0], [0], [1], [0, 0, 1, 1], [], []>} : vector<8x32xf32>, vector<32x32xf32>, vector<8x32xf32> -> vector<8x32xf32>
    %cst_23 = arith.constant dense<0.000000e+00> : vector<8x32xf32>
    %47 = tpu.matmul %25, %46, %cst_23 {dimension_numbers = #tpu.dot_dimension_numbers<[1], [0], [0], [1], [0, 0, 1, 1], [], []>} : vector<8x8xf32>, vector<8x32xf32>, vector<8x32xf32> -> vector<8x32xf32>
    %48 = vector.broadcast %45 : vector<1x32xf32> to vector<8x32xf32>
    %49 = arith.addf %47, %48 : vector<8x32xf32>
    %cst_24 = arith.constant 0.000000e+00 : f32
    %50 = vector.broadcast %cst_24 : f32 to vector<8x32xf32>
    %51 = arith.maximumf %49, %50 : vector<8x32xf32>
    %cst_25 = arith.constant dense<0.000000e+00> : vector<32xf32>
    %52 = vector.multi_reduction <add>, %51, %cst_25 [0] : vector<8x32xf32> to vector<32xf32>
    %53 = vector.shape_cast %52 : vector<32xf32> to vector<1x32xf32>
    %cst_26 = arith.constant 8.000000e+00 : f32
    %54 = vector.broadcast %cst_26 : f32 to vector<1x32xf32>
    %55 = arith.divf %53, %54 : vector<1x32xf32>
    %c323 = arith.constant 323 : index
    %c0_27 = arith.constant 0 : index
    %56 = vector.load %arg1[%c323, %c0_27] : memref<328x32xf32, #tpu.memory_space<vmem>>, vector<1x32xf32>
    %57 = arith.mulf %55, %56 : vector<1x32xf32>
    %cst_28 = arith.constant dense<0.000000e+00> : vector<1xf32>
    %58 = vector.multi_reduction <add>, %57, %cst_28 [1] : vector<1x32xf32> to vector<1xf32>
    %59 = vector.shape_cast %58 : vector<1xf32> to vector<1x1xf32>
    %c324 = arith.constant 324 : index
    %c0_29 = arith.constant 0 : index
    %60 = vector.load %arg1[%c324, %c0_29] : memref<328x32xf32, #tpu.memory_space<vmem>>, vector<1x1xf32>
    %61 = arith.addf %59, %60 : vector<1x1xf32>
    %62 = vector.shape_cast %61 : vector<1x1xf32> to vector<1x1xf32>
    %63 = vector.broadcast %62 : vector<1x1xf32> to vector<8x128xf32>
    %c0_30 = arith.constant 0 : index
    %c0_31 = arith.constant 0 : index
    %c0_32 = arith.constant 0 : index
    %64 = vector.load %arg4[%c0_30, %c0_31, %c0_32] : memref<1x8x128xf32, #tpu.memory_space<vmem>>, vector<1x8x128xf32>
    %65 = vector.shape_cast %64 : vector<1x8x128xf32> to vector<8x128xf32>
    %66 = vector.shape_cast %63 : vector<8x128xf32> to vector<1x8x128xf32>
    tpu.vector_store %arg4[%c0_30, %c0_31, %c0_32], %66 {strides = array<i32>} : memref<1x8x128xf32, #tpu.memory_space<vmem>>, vector<1x8x128xf32>,
    return
  }
  func.func @transform_0(%arg0: i32) -> (i32, i32) {
    %c0_i32 = arith.constant 0 : i32
    %c0_i32_0 = arith.constant 0 : i32
    %c0_i32_1 = arith.constant 0 : i32
    return %c0_i32, %c0_i32_0 : i32, i32
  }
  func.func @transform_1(%arg0: i32) -> (i32, i32, i32) {
    %c0_i32 = arith.constant 0 : i32
    %c0_i32_0 = arith.constant 0 : i32
    %c0_i32_1 = arith.constant 0 : i32
    return %arg0, %c0_i32, %c0_i32_0 : i32, i32, i32
  }
  func.func @transform_2(%arg0: i32) -> (i32, i32, i32) {
    %c0_i32 = arith.constant 0 : i32
    %c0_i32_0 = arith.constant 0 : i32
    %c0_i32_1 = arith.constant 0 : i32
    return %arg0, %c0_i32, %c0_i32_0 : i32, i32, i32
  }
  func.func @transform_3(%arg0: i32) -> (i32, i32, i32) {
    %c0_i32 = arith.constant 0 : i32
    %c0_i32_0 = arith.constant 0 : i32
    %c0_i32_1 = arith.constant 0 : i32
    return %arg0, %c0_i32, %c0_i32_0 : i32, i32, i32
  }
}

</mosaic_0001>

<llo_original>
// kernel: gcn_forward.1
$region0: #{gcn_forward.1}
  #allocation0 [shape = 'u32[]', space=smem, size = 0x4, offset = 0x4, fixed_abs, tag = 'smem constant byte address 0x4 - core index']
  #allocation1 [shape = 'u32[72,128]{1,0:T(1,128)}', space=vmem, size = 0x9000, scoped, tag = 'internal scratch']
  %s0 = inlined_call_operand.vmem [shape: f32[328,32], index: 0, kind: input, shape index: {}]
  %s1 = inlined_call_operand.vmem [shape: f32[4,8,256], index: 1, kind: input, shape index: {}]
  %s2 = inlined_call_operand.vmem [shape: s32[4,24,2], index: 2, kind: input, shape index: {}]
  %s3 = inlined_call_operand.vmem [shape: f32[4,8,128], index: 3, kind: output, shape index: {}]
  %s4 = sld [smem:[#allocation0]]
  $region45: #{gcn_forward.1} parent=0
    _
  %s6 = ssub.s32 1, %s4
  %s7 = scalar_select 0, %s6, %s4
  loop: start=0, step=1, limit=6
  $region2: #{gcn_forward.1} parent=0 // loop_pre_header
    _
  $region3: #{gcn_forward.1} parent=0 // loop_header
    %s9 = sphi 0, %s13
    %p10 = scmp.ge.s32.totalorder %s9, 6
    %s17 = sphi 0, %s17
    %s19 = sphi 0, %s17
    %s20 = sphi 0, %s19
    %s34 = sphi 0, %s20
    %s40 = sphi 0, %s42
    %s43 = sphi 0, %s40
    %s44 = sphi 0, %s43
    %s60 = sphi 0, %s44
    %s66 = sphi 0, %s68
    %s69 = sphi 0, %s66
    %s70 = sphi 0, %s69
    %s86 = sphi 0, %s70
    %s92 = sphi 0, %s94
    %s95 = sphi 0, %s92
    %s96 = sphi 0, %s95
    %s112 = sphi 0, %s96
  $region4: #{gcn_forward.1} parent=0 // loop_header_branch
    %12 = sbr.rel (%p10) target = $region8
  $region5: #{gcn_forward.1} parent=0 // loop_body
    %s14 = ssub.s32 %s9, 1
    %s15 = ssub.s32 %s9, 2
    %s16 = sadd.s32 %s9, 1
    %s18 = sadd.s32 %s17, 1
    %p21 = scmp.eq.s32.totalorder %s9, 3
    %p22 = scmp.ne.s32.totalorder %s17, %s19
    %p23 = scmp.eq.s32.totalorder %s9, 0
    %p24 = por %p22, %p23
    %p25 = scmp.ne.s32.totalorder %s17, %s19
    %p26 = scmp.eq.s32.totalorder %s14, 3
    %p27 = por %p25, %p26
    %p28 = scmp.ne.s32.totalorder %s19, %s20
    %p29 = scmp.eq.s32.totalorder %s14, 0
    %p30 = por %p28, %p29
    %p31 = scmp.ne.s32.totalorder %s19, %s20
    %p32 = scmp.eq.s32.totalorder %s15, 3
    %p33 = por %p31, %p32
    %p35 = scmp.ne.s32.totalorder %s20, %s34
    %p36 = scmp.eq.s32.totalorder %s15, 0
    %p37 = por %p35, %p36
    %s38 = ssub.s32 %s9, %s16
    %p39 = scmp.eq.s32.totalorder %s38, 0
    %s41 = sadd.s32 %s40, 1
    %s42 = scalar_select %p39, %s40, %s41
    %p45 = pneg %p39
    %p46 = scmp.eq.s32.totalorder %s9, 3
    %p47 = por %p45, %p46
    %p48 = scmp.ne.s32.totalorder %s40, %s43
    %p49 = scmp.eq.s32.totalorder %s9, 0
    %p50 = por %p48, %p49
    %p51 = scmp.ne.s32.totalorder %s40, %s43
    %p52 = scmp.eq.s32.totalorder %s14, 3
    %p53 = por %p51, %p52
    %p54 = scmp.ne.s32.totalorder %s43, %s44
    %p55 = scmp.eq.s32.totalorder %s14, 0
    %p56 = por %p54, %p55
    %p57 = scmp.ne.s32.totalorder %s43, %s44
    %p58 = scmp.eq.s32.totalorder %s15, 3
    %p59 = por %p57, %p58
    %p61 = scmp.ne.s32.totalorder %s44, %s60
    %p62 = scmp.eq.s32.totalorder %s15, 0
    %p63 = por %p61, %p62
    %s64 = ssub.s32 %s9, %s16
    %p65 = scmp.eq.s32.totalorder %s64, 0
    %s67 = sadd.s32 %s66, 1
    %s68 = scalar_select %p65, %s66, %s67
    %p71 = pneg %p65
    %p72 = scmp.eq.s32.totalorder %s9, 3
    %p73 = por %p71, %p72
    %p74 = scmp.ne.s32.totalorder %s66, %s69
    %p75 = scmp.eq.s32.totalorder %s9, 0
    %p76 = por %p74, %p75
    %p77 = scmp.ne.s32.totalorder %s66, %s69
    %p78 = scmp.eq.s32.totalorder %s14, 3
    %p79 = por %p77, %p78
    %p80 = scmp.ne.s32.totalorder %s69, %s70
    %p81 = scmp.eq.s32.totalorder %s14, 0
    %p82 = por %p80, %p81
    %p83 = scmp.ne.s32.totalorder %s69, %s70
    %p84 = scmp.eq.s32.totalorder %s15, 3
    %p85 = por %p83, %p84
    %p87 = scmp.ne.s32.totalorder %s70, %s86
    %p88 = scmp.eq.s32.totalorder %s15, 0
    %p89 = por %p87, %p88
    %s90 = ssub.s32 %s9, %s16
    %p91 = scmp.eq.s32.totalorder %s90, 0
    %s93 = sadd.s32 %s92, 1
    %s94 = scalar_select %p91, %s92, %s93
    %p97 = pneg %p91
    %p98 = scmp.eq.s32.totalorder %s9, 3
    %p99 = por %p97, %p98
    %p100 = scmp.ne.s32.totalorder %s92, %s95
    %p101 = scmp.eq.s32.totalorder %s9, 0
    %p102 = por %p100, %p101
    %p103 = scmp.ne.s32.totalorder %s92, %s95
    %p104 = scmp.eq.s32.totalorder %s14, 3
    %p105 = por %p103, %p104
    %p106 = scmp.ne.s32.totalorder %s95, %s96
    %p107 = scmp.eq.s32.totalorder %s14, 0
    %p108 = por %p106, %p107
    %p109 = scmp.ne.s32.totalorder %s95, %s96
    %p110 = scmp.eq.s32.totalorder %s15, 3
    %p111 = por %p109, %p110
    %p113 = scmp.ne.s32.totalorder %s96, %s112
    %p114 = scmp.eq.s32.totalorder %s15, 0
    %p115 = por %p113, %p114
    %p116 = scmp.le.s32.totalorder 1, %s9
    %p117 = scmp.lt.s32.totalorder %s9, 5
    %p118 = pnand %p116, %p117
    %p119 = pneg %p118
    // Predicated region
    $region9: #{gcn_forward.1} parent=5 // pred_check
      _
    $region10: #{gcn_forward.1} parent=5 // pred_check_branch
      %121 = sbr.rel (%p118) target = $region12
    $region11: #{gcn_forward.1} parent=5 // pred_region
      %s122 = ssub.s32 %s9, 1
      // Predicated region
      $region13: #{gcn_forward.1} parent=11 // pred_check
        %p123 = pneg %p30
      $region14: #{gcn_forward.1} parent=11 // pred_check_branch
        %125 = sbr.rel (%p123) target = $region16
      $region15: #{gcn_forward.1} parent=11 // pred_region
        _
      $region16: #{gcn_forward.1} parent=11 // pred_fallthru
        _
    $region12: #{gcn_forward.1} parent=5 // pred_fallthru
      _
    %p126 = scmp.lt.s32.totalorder %s9, 4
    // Predicated region
    $region17: #{gcn_forward.1} parent=5 // pred_check
      %p127 = pneg %p126
    $region18: #{gcn_forward.1} parent=5 // pred_check_branch
      %129 = sbr.rel (%p127) target = $region20
    $region19: #{gcn_forward.1} parent=5 // pred_region
      // Predicated region
      $region21: #{gcn_forward.1} parent=19 // pred_check
        %p130 = pneg %p50
      $region22: #{gcn_forward.1} parent=19 // pred_check_branch
        %132 = sbr.rel (%p130) target = $region24
      $region23: #{gcn_forward.1} parent=19 // pred_region
        %p133 = scmp.lt.s32.totalorder %s9, 3
        %s134 = scalar_select %p133, %s9, 3
        %s135 = smul.addr %s134, 2
        %s136 = smul.addr %s135, 8
        %s137 = scalar_lea.vmem %s1, %s136
      $region24: #{gcn_forward.1} parent=19 // pred_fallthru
        _
      // Predicated region
      $region25: #{gcn_forward.1} parent=19 // pred_check
        %p138 = pneg %p76
      $region26: #{gcn_forward.1} parent=19 // pred_check_branch
        %140 = sbr.rel (%p138) target = $region28
      $region27: #{gcn_forward.1} parent=19 // pred_region
        %p141 = scmp.lt.s32.totalorder %s9, 3
        %s142 = scalar_select %p141, %s9, 3
        %s143 = smul.addr %s142, 3
        %s144 = smul.addr %s143, 8
        %s145 = scalar_lea.vmem %s2, %s144
      $region28: #{gcn_forward.1} parent=19 // pred_fallthru
        _
    $region20: #{gcn_forward.1} parent=5 // pred_fallthru
      _
    %p146 = scmp.le.s32.totalorder 1, %s9
    %p147 = scmp.lt.s32.totalorder %s9, 5
    %p148 = pnand %p146, %p147
    %p149 = pneg %p148
    // Predicated region
    $region29: #{gcn_forward.1} parent=5 // pred_check
      _
    $region30: #{gcn_forward.1} parent=5 // pred_check_branch
      %151 = sbr.rel (%p148) target = $region32
    $region31: #{gcn_forward.1} parent=5 // pred_region
      %s152 = ssub.s32 %s9, 1
      %p153 = pneg %p30
      %p154 = pneg %p27
      %p155 = scmp.lt.s32.totalorder %s14, 3
      %s156 = scalar_select %p155, %s14, 3
      %s157 = smul.addr %s156, 2
      %s158 = smul.addr %s157, 8
      %s159 = scalar_lea.vmem %s1, %s158
      %p160 = pneg %p56
      %p161 = pneg %p53
      %p162 = scmp.lt.s32.totalorder %s14, 3
      %s163 = scalar_select %p162, %s14, 3
      %s164 = smul.addr %s163, 3
      %s165 = smul.addr %s164, 8
      %s166 = scalar_lea.vmem %s2, %s165
      %p167 = pneg %p82
      %p168 = pneg %p79
      %p169 = pneg %p108
      %p170 = pneg %p105
      %p171 = scmp.lt.s32.totalorder %s14, 3
      %s172 = scalar_select %p171, %s14, 3
      %s173 = smul.addr %s172, 8
      %s174 = scalar_lea.vmem %s3, %s173
      %p175 = scmp.lt.s32.totalorder %s14, 3
      %s176 = scalar_select %p175, %s14, 3
      %s177 = smul.addr %s176, 2
      %s178 = smul.addr %s177, 8
      %s179 = scalar_lea.vmem %s1, %s178
      %p180 = scmp.lt.s32.totalorder %s14, 3
      %s181 = scalar_select %p180, %s14, 3
      %s182 = smul.addr %s181, 3
      %s183 = smul.addr %s182, 8
      %s184 = scalar_lea.vmem %s2, %s183
      %p185 = scmp.lt.s32.totalorder %s14, 3
      %s186 = scalar_select %p185, %s14, 3
      %s187 = smul.addr %s186, 8
      %s188 = scalar_lea.vmem %s3, %s187
      %v189 = vlaneseq
      %v190 = vand.u32 %v189, 127
      %v191 = vld [vmem:[%s184] sm:$0xff]
      %v192 = vld [vmem:[%s184 + $0x8] sm:$0xff]
      %v193 = vld [vmem:[%s184 + $0x10] sm:$0xff]
      %194 = vset.pattern.permute.xlu0 0
      %195 = vperm.xlu0 %194, %v191
      %v196 = vpop.permute.xlu0 %195
      %197 = vset.pattern.permute.xlu0 0
      %198 = vperm.xlu0 %197, %v192
      %v199 = vpop.permute.xlu0 %198
      %200 = vset.pattern.permute.xlu0 0
      %201 = vperm.xlu0 %200, %v193
      %v202 = vpop.permute.xlu0 %201
      %vm203 = vcmp.eq.s32.totalorder %v196, %v190
      %vm204 = vcmp.eq.s32.totalorder %v199, %v190
      %vm205 = vcmp.eq.s32.totalorder %v202, %v190
      %v206 = vsel %vm203, 1, 0
      %v207 = vsel %vm204, 1, 0
      %v208 = vsel %vm205, 1, 0
      %v209 = vcvt.s32.f32 %v206
      %v210 = vcvt.s32.f32 %v207
      %v211 = vcvt.s32.f32 %v208
      %212 = vset.pattern.permute.xlu0 1
      %213 = vperm.xlu0 %212, %v191
      %v214 = vpop.permute.xlu0 %213
      %215 = vset.pattern.permute.xlu0 1
      %216 = vperm.xlu0 %215, %v192
      %v217 = vpop.permute.xlu0 %216
      %218 = vset.pattern.permute.xlu0 1
      %219 = vperm.xlu0 %218, %v193
      %v220 = vpop.permute.xlu0 %219
      %vm221 = vcmp.eq.s32.totalorder %v214, %v190
      %vm222 = vcmp.eq.s32.totalorder %v217, %v190
      %vm223 = vcmp.eq.s32.totalorder %v220, %v190
      %v224 = vsel %vm221, 1, 0
      %v225 = vsel %vm222, 1, 0
      %v226 = vsel %vm223, 1, 0
      %v227 = vcvt.s32.f32 %v224
      %v228 = vcvt.s32.f32 %v225
      %v229 = vcvt.s32.f32 %v226
      %230 = vxpose.xlu0.b32.start [1/16] %v227, 128
      %231 = vxpose.xlu0.b32.cont [2/16] %v228, 128
      %232 = vxpose.xlu0.b32.cont [3/16] %v229, 128
      %233 = vxpose.xlu0.b32.cont [4/16] 0.0, 128
      %234 = vxpose.xlu0.b32.cont [5/16] 0.0, 128
      %235 = vxpose.xlu0.b32.cont [6/16] 0.0, 128
      %236 = vxpose.xlu0.b32.cont [7/16] 0.0, 128
      %237 = vxpose.xlu0.b32.cont [8/16] 0.0, 128
      %238 = vxpose.xlu0.b32.cont [9/16] 0.0, 128
      %239 = vxpose.xlu0.b32.cont [10/16] 0.0, 128
      %240 = vxpose.xlu0.b32.cont [11/16] 0.0, 128
      %241 = vxpose.xlu0.b32.cont [12/16] 0.0, 128
      %242 = vxpose.xlu0.b32.cont [13/16] 0.0, 128
      %243 = vxpose.xlu0.b32.cont [14/16] 0.0, 128
      %244 = vxpose.xlu0.b32.cont [15/16] 0.0, 128
      %245 = vxpose.xlu0.b32.end [16/16] 0.0, 128
      %v246 = vpop.trf.xlu0
      %v247 = vpop.trf.xlu0
      %v248 = vpop.trf.xlu0
      %v249 = vpop.trf.xlu0
      %v250 = vpop.trf.xlu0
      %v251 = vpop.trf.xlu0
      %v252 = vpop.trf.xlu0
      %v253 = vpop.trf.xlu0
      %v254 = vpop.trf.xlu0
      %v255 = vpop.trf.xlu0
      %v256 = vpop.trf.xlu0
      %v257 = vpop.trf.xlu0
      %v258 = vpop.trf.xlu0
      %v259 = vpop.trf.xlu0
      %v260 = vpop.trf.xlu0
      %v261 = vpop.trf.xlu0
      %vm262 = vcmask 195584
      %v264 = vsel %vm262, %v246, 0
      %266 = vmatpush.msra.mxu0 0.0
      %267 = vmatpush.msra.mxu0 0.0
      %268 = vmatpush.msra.mxu0 0.0
      %269 = vmatpush.msra.mxu0 0.0
      %270 = vmatpush.msra.mxu0 0.0
      %271 = vmatpush.msra.mxu0 0.0
      %272 = vmatpush.msra.mxu0 0.0
      %273 = vmatpush.msra.mxu0 0.0
      %274 = vmatpush.msra.mxu0 0.0
      %275 = vmatpush.msra.mxu0 0.0
      %276 = vmatpush.msra.mxu0 0.0
      %277 = vmatpush.msra.mxu0 0.0
      %278 = vmatpush.msra.mxu0 0.0
      %279 = vmatpush.msra.mxu0 %v211
      %280 = vmatpush.msra.mxu0 %v210
      %281 = vmatpush.msra.mxu0 %v209
      %282 = vmatmul.f32.gmra.mxu0 %v264
      %v283 = vpop.f32.mrf.mxu0
      %v284 = vadd.f32 0.0, %v283
      %285 = vdwg.mxu0
      %vm286 = vcmask 64512
      %v287 = vsel %vm286, %v227, 0.0
      %v288 = vsel %vm286, %v228, 0.0
      %v289 = vadd.f32 %v287, %v288
      %v290 = vsel %vm286, %v229, 0.0
      %v291 = vadd.f32 %v289, %v290
      %v292 = vrot.slane %v291, 4
      %v293 = vadd.f32 %v291, %v292
      %v294 = vrot.slane %v293, 2
      %v295 = vadd.f32 %v293, %v294
      %v296 = vrot.slane %v295, 1
      %v297 = vadd.f32 %v295, %v296
      %v298 = vrsqrt.pop %v297
      %v299 = vmul.f32 %v298, %v297
      %v300 = vmul.f32 %v299, %v298
      %v301 = vmul.f32 0.5, %v300
      %v302 = vsub.f32 1.5, %v301
      %v303 = vmul.f32 %v298, %v302
      %vm304 = vweird.f32 %v297
      %vm305 = vweird.f32 %v298
      %vm306 = vmor %vm304, %vm305
      %v307 = vsel %vm306, %v298, %v303
      %v308 = vsel %vm286, %v284, 0.0
      %309 = vadd.xlane.f32.xlu0 %v308
      %v310 = vpop.xlane.xlu0 %309
      %v311 = vrsqrt.pop %v310
      %v312 = vmul.f32 %v311, %v310
      %v313 = vmul.f32 %v312, %v311
      %v314 = vmul.f32 0.5, %v313
      %v315 = vsub.f32 1.5, %v314
      %v316 = vmul.f32 %v311, %v315
      %vm317 = vweird.f32 %v310
      %vm318 = vweird.f32 %v311
      %vm319 = vmor %vm317, %vm318
      %v320 = vsel %vm319, %v311, %v316
      %v321 = vmul.f32 %v320, %v284
      %v322 = vmul.f32 %v321, %v307
      %v323 = vld [vmem:[%s179] sm:$0xff]
      %v324 = vld [vmem:[%s179 + $0x8] sm:$0xff]
      %v325 = vld [vmem:[%s0] sm:$0xff]
      %v326 = vld [vmem:[%s0 + $0x8] sm:$0xff]
      %v327 = vld [vmem:[%s0 + $0x10] sm:$0xff]
      %v328 = vld [vmem:[%s0 + $0x18] sm:$0xff]
      %v329 = vld [vmem:[%s0 + $0x20] sm:$0xff]
      %v330 = vld [vmem:[%s0 + $0x28] sm:$0xff]
      %v331 = vld [vmem:[%s0 + $0x30] sm:$0xff]
      %v332 = vld [vmem:[%s0 + $0x38] sm:$0xff]
      %v333 = vld [vmem:[%s0 + $0x40] sm:$0xff]
      %v334 = vld [vmem:[%s0 + $0x48] sm:$0xff]
      %v335 = vld [vmem:[%s0 + $0x50] sm:$0xff]
      %v336 = vld [vmem:[%s0 + $0x58] sm:$0xff]
      %v337 = vld [vmem:[%s0 + $0x60] sm:$0xff]
      %v338 = vld [vmem:[%s0 + $0x68] sm:$0xff]
      %v339 = vld [vmem:[%s0 + $0x70] sm:$0xff]
      %v340 = vld [vmem:[%s0 + $0x78] sm:$0xff]
      %v341 = vld [vmem:[%s0 + $0x80] sm:$0xff]
      %v342 = vld [vmem:[%s0 + $0x88] sm:$0xff]
      %v343 = vld [vmem:[%s0 + $0x90] sm:$0xff]
      %v344 = vld [vmem:[%s0 + $0x98] sm:$0xff]
      %v345 = vld [vmem:[%s0 + $0xa0] sm:$0xff]
      %v346 = vld [vmem:[%s0 + $0xa8] sm:$0xff]
      %v347 = vld [vmem:[%s0 + $0xb0] sm:$0xff]
      %v348 = vld [vmem:[%s0 + $0xb8] sm:$0xff]
      %v349 = vld [vmem:[%s0 + $0xc0] sm:$0xff]
      %v350 = vld [vmem:[%s0 + $0xc8] sm:$0xff]
      %v351 = vld [vmem:[%s0 + $0xd0] sm:$0xff]
      %v352 = vld [vmem:[%s0 + $0xd8] sm:$0xff]
      %v353 = vld [vmem:[%s0 + $0xe0] sm:$0xff]
      %v354 = vld [vmem:[%s0 + $0xe8] sm:$0xff]
      %v355 = vld [vmem:[%s0 + $0xf0] sm:$0xff]
      %v356 = vld [vmem:[%s0 + $0xf8] sm:$0xff]
      %v357 = vld [vmem:[%s0 + $0x140] sm:$0x1]
      %358 = vmatpush.msra.mxu0 %v340
      %359 = vmatpush.msra.mxu0 %v339
      %360 = vmatpush.msra.mxu0 %v338
      %361 = vmatpush.msra.mxu0 %v337
      %362 = vmatpush.msra.mxu0 %v336
      %363 = vmatpush.msra.mxu0 %v335
      %364 = vmatpush.msra.mxu0 %v334
      %365 = vmatpush.msra.mxu0 %v333
      %366 = vmatpush.msra.mxu0 %v332
      %367 = vmatpush.msra.mxu0 %v331
      %368 = vmatpush.msra.mxu0 %v330
      %369 = vmatpush.msra.mxu0 %v329
      %370 = vmatpush.msra.mxu0 %v328
      %371 = vmatpush.msra.mxu0 %v327
      %372 = vmatpush.msra.mxu0 %v326
      %373 = vmatpush.msra.mxu0 %v325
      %374 = vmatmul.f32.gmra.mxu0 %v323
      %v375 = vpop.f32.mrf.mxu0
      %v376 = vadd.f32 0.0, %v375
      %377 = vdwg.mxu0
      %378 = vmatpush.msra.mxu0 %v356
      %379 = vmatpush.msra.mxu0 %v355
      %380 = vmatpush.msra.mxu0 %v354
      %381 = vmatpush.msra.mxu0 %v353
      %382 = vmatpush.msra.mxu0 %v352
      %383 = vmatpush.msra.mxu0 %v351
      %384 = vmatpush.msra.mxu0 %v350
      %385 = vmatpush.msra.mxu0 %v349
      %386 = vmatpush.msra.mxu0 %v348
      %387 = vmatpush.msra.mxu0 %v347
      %388 = vmatpush.msra.mxu0 %v346
      %389 = vmatpush.msra.mxu0 %v345
      %390 = vmatpush.msra.mxu0 %v344
      %391 = vmatpush.msra.mxu0 %v343
      %392 = vmatpush.msra.mxu0 %v342
      %393 = vmatpush.msra.mxu0 %v341
      %394 = vmatmul.f32.gmra.mxu0 %v324
      %v395 = vpop.f32.mrf.mxu0
      %v396 = vadd.f32 %v376, %v395
      %397 = vdwg.mxu0
      %v398 = vperm.slane %v357, 0
      %v400 = vsel %vm286, %v322, 0
      %402 = vmatpush.msra.mxu0 0.0
      %403 = vmatpush.msra.mxu0 0.0
      %404 = vmatpush.msra.mxu0 0.0
      %405 = vmatpush.msra.mxu0 0.0
      %406 = vmatpush.msra.mxu0 0.0
      %407 = vmatpush.msra.mxu0 0.0
      %408 = vmatpush.msra.mxu0 0.0
      %409 = vmatpush.msra.mxu0 0.0
      %410 = vmatpush.msra.mxu0 0.0
      %411 = vmatpush.msra.mxu0 0.0
      %412 = vmatpush.msra.mxu0 0.0
      %413 = vmatpush.msra.mxu0 0.0
      %414 = vmatpush.msra.mxu0 0.0
      %415 = vmatpush.msra.mxu0 0.0
      %416 = vmatpush.msra.mxu0 0.0
      %417 = vmatpush.msra.mxu0 %v396
      %418 = vmatmul.f32.gmra.mxu0 %v400
      %v419 = vpop.f32.mrf.mxu0
      %v420 = vadd.f32 %v398, %v419
      %421 = vdwg.mxu0
      %v422 = vmax.f32 %v420, 0.0
      %v423 = vld [vmem:[%s0 + $0x100] sm:$0xff]
      %v424 = vld [vmem:[%s0 + $0x108] sm:$0xff]
      %v425 = vld [vmem:[%s0 + $0x110] sm:$0xff]
      %v426 = vld [vmem:[%s0 + $0x118] sm:$0xff]
      %v427 = vld [vmem:[%s0 + $0x141] sm:$0x1]
      %vm428 = vcmask 261120
      %v430 = vsel %vm428, %v422, 0
      %432 = vmatpush.msra.mxu0 0.0
      %433 = vmatpush.msra.mxu0 0.0
      %434 = vmatpush.msra.mxu0 0.0
      %435 = vmatpush.msra.mxu0 0.0
      %436 = vmatpush.msra.mxu0 0.0
      %437 = vmatpush.msra.mxu0 0.0
      %438 = vmatpush.msra.mxu0 0.0
      %439 = vmatpush.msra.mxu0 0.0
      %440 = vmatpush.msra.mxu0 0.0
      %441 = vmatpush.msra.mxu0 0.0
      %442 = vmatpush.msra.mxu0 0.0
      %443 = vmatpush.msra.mxu0 0.0
      %444 = vmatpush.msra.mxu0 %v426
      %445 = vmatpush.msra.mxu0 %v425
      %446 = vmatpush.msra.mxu0 %v424
      %447 = vmatpush.msra.mxu0 %v423
      %448 = vmatmul.f32.gmra.mxu0 %v430
      %v449 = vpop.f32.mrf.mxu0
      %v450 = vadd.f32 0.0, %v449
      %451 = vdwg.mxu0
      %v452 = vperm.slane %v427, 0
      %453 = vmatpush.msra.mxu0 0.0
      %454 = vmatpush.msra.mxu0 0.0
      %455 = vmatpush.msra.mxu0 0.0
      %456 = vmatpush.msra.mxu0 0.0
      %457 = vmatpush.msra.mxu0 0.0
      %458 = vmatpush.msra.mxu0 0.0
      %459 = vmatpush.msra.mxu0 0.0
      %460 = vmatpush.msra.mxu0 0.0
      %461 = vmatpush.msra.mxu0 0.0
      %462 = vmatpush.msra.mxu0 0.0
      %463 = vmatpush.msra.mxu0 0.0
      %464 = vmatpush.msra.mxu0 0.0
      %465 = vmatpush.msra.mxu0 0.0
      %466 = vmatpush.msra.mxu0 0.0
      %467 = vmatpush.msra.mxu0 0.0
      %468 = vmatpush.msra.mxu0 %v450
      %469 = vmatmul.f32.gmra.mxu0 %v400
      %v470 = vpop.f32.mrf.mxu0
      %v471 = vadd.f32 %v452, %v470
      %472 = vdwg.mxu0
      %v473 = vmax.f32 %v471, 0.0
      %v474 = vld [vmem:[%s0 + $0x120] sm:$0xff]
      %v475 = vld [vmem:[%s0 + $0x128] sm:$0xff]
      %v476 = vld [vmem:[%s0 + $0x130] sm:$0xff]
      %v477 = vld [vmem:[%s0 + $0x138] sm:$0xff]
      %v478 = vld [vmem:[%s0 + $0x142] sm:$0x1]
      %v480 = vsel %vm428, %v473, 0
      %482 = vmatpush.msra.mxu0 0.0
      %483 = vmatpush.msra.mxu0 0.0
      %484 = vmatpush.msra.mxu0 0.0
      %485 = vmatpush.msra.mxu0 0.0
      %486 = vmatpush.msra.mxu0 0.0
      %487 = vmatpush.msra.mxu0 0.0
      %488 = vmatpush.msra.mxu0 0.0
      %489 = vmatpush.msra.mxu0 0.0
      %490 = vmatpush.msra.mxu0 0.0
      %491 = vmatpush.msra.mxu0 0.0
      %492 = vmatpush.msra.mxu0 0.0
      %493 = vmatpush.msra.mxu0 0.0
      %494 = vmatpush.msra.mxu0 %v477
      %495 = vmatpush.msra.mxu0 %v476
      %496 = vmatpush.msra.mxu0 %v475
      %497 = vmatpush.msra.mxu0 %v474
      %498 = vmatmul.f32.gmra.mxu0 %v480
      %v499 = vpop.f32.mrf.mxu0
      %v500 = vadd.f32 0.0, %v499
      %501 = vdwg.mxu0
      %v502 = vperm.slane %v478, 0
      %503 = vmatpush.msra.mxu0 0.0
      %504 = vmatpush.msra.mxu0 0.0
      %505 = vmatpush.msra.mxu0 0.0
      %506 = vmatpush.msra.mxu0 0.0
      %507 = vmatpush.msra.mxu0 0.0
      %508 = vmatpush.msra.mxu0 0.0
      %509 = vmatpush.msra.mxu0 0.0
      %510 = vmatpush.msra.mxu0 0.0
      %511 = vmatpush.msra.mxu0 0.0
      %512 = vmatpush.msra.mxu0 0.0
      %513 = vmatpush.msra.mxu0 0.0
      %514 = vmatpush.msra.mxu0 0.0
      %515 = vmatpush.msra.mxu0 0.0
      %516 = vmatpush.msra.mxu0 0.0
      %517 = vmatpush.msra.mxu0 0.0
      %518 = vmatpush.msra.mxu0 %v500
      %519 = vmatmul.f32.gmra.mxu0 %v400
      %v520 = vpop.f32.mrf.mxu0
      %v521 = vadd.f32 %v502, %v520
      %522 = vdwg.mxu0
      %v523 = vmax.f32 %v521, 0.0
      %v524 = vsel %vm428, %v523, 0.0
      %v525 = vrot.slane %v524, 4
      %v526 = vadd.f32 %v524, %v525
      %v527 = vrot.slane %v526, 2
      %v528 = vadd.f32 %v526, %v527
      %v529 = vrot.slane %v528, 1
      %v530 = vadd.f32 %v528, %v529
      %v531 = vrcp.pop 8.0
      %v532 = vmul.f32 8.0, %v531
      %v533 = vsub.f32 1.0, %v532
      %v534 = vmul.f32 %v531, %v533
      %v535 = vadd.f32 %v531, %v534
      %vm536 = vweird.f32 %v531
      %v537 = vsel %vm536, %v531, %v535
      %v538 = vmul.f32 %v530, %v537
      %v539 = vld [vmem:[%s0 + $0x143] sm:$0x1]
      %v540 = vmul.f32 %v538, %v539
      %vm541 = vcmask 253952
      %v542 = vsel %vm541, %v540, 0.0
      %543 = vadd.xlane.f32.xlu0 %v542
      %v544 = vpop.xlane.xlu0 %543
      %v545 = vld [vmem:[%s0 + $0x144] sm:$0x1]
      %v546 = vadd.f32 %v544, %v545
      %s548 = vtos %v546
      %v549 = vstv %s548
      %551 = vst [vmem:[%s188] sm:$0xff] %v549
      %p552 = scmp.lt.s32.totalorder %s14, 3
      %s553 = scalar_select %p552, %s14, 3
      %s554 = smul.addr %s553, 8
      %s555 = scalar_lea.vmem %s3, %s554
      // Predicated region
      $region33: #{gcn_forward.1} parent=31 // pred_check
        %p556 = pneg %p105
      $region34: #{gcn_forward.1} parent=31 // pred_check_branch
        %558 = sbr.rel (%p556) target = $region36
      $region35: #{gcn_forward.1} parent=31 // pred_region
        _
      $region36: #{gcn_forward.1} parent=31 // pred_fallthru
        _
    $region32: #{gcn_forward.1} parent=5 // pred_fallthru
      _
    %p559 = scmp.le.s32.totalorder 2, %s9
    // Predicated region
    $region37: #{gcn_forward.1} parent=5 // pred_check
      %p560 = pneg %p559
    $region38: #{gcn_forward.1} parent=5 // pred_check_branch
      %562 = sbr.rel (%p560) target = $region40
    $region39: #{gcn_forward.1} parent=5 // pred_region
      %s563 = ssub.s32 %s9, 2
      // Predicated region
      $region41: #{gcn_forward.1} parent=39 // pred_check
        %p564 = pneg %p111
      $region42: #{gcn_forward.1} parent=39 // pred_check_branch
        %566 = sbr.rel (%p564) target = $region44
      $region43: #{gcn_forward.1} parent=39 // pred_region
        %p567 = scmp.lt.s32.totalorder %s15, 3
        %s568 = scalar_select %p567, %s15, 3
        %s569 = smul.addr %s568, 8
        %s570 = scalar_lea.vmem %s3, %s569
      $region44: #{gcn_forward.1} parent=39 // pred_fallthru
        _
    $region40: #{gcn_forward.1} parent=5 // pred_fallthru
      _
  $region6: #{gcn_forward.1} parent=0 // loop_footer
    %s13 = sadd.s32 1, %s9
  $region7: #{gcn_forward.1} parent=0 // loop_footer_branch
    %8 = sbr.rel target = $region3
  $region8: #{gcn_forward.1} parent=0 // loop_exit
    _

</llo_original>
